<compile_context>
chip_gen: v7x
topology: tpu7x:2x2x1
jax: 0.10.0
libtpu: 0.0.40
codegen_flags: <defaults>
</compile_context>

<pallas_src>
import math

import jax
import jax.numpy as jnp
from jax import lax
from jax.experimental import pallas as pl
from jax.experimental.pallas import tpu as pltpu


def _round_up(x, m):
    return ((x + m - 1) // m) * m


def _choose_row_split(B, F, itemsize, max_rows=1024):
    """Pick R so (B, F) reshapes (free, row-major) to (B*R, F//R) with dense
    sublanes (rows % sublane == 0) and dense lanes (cols % 128 == 0)."""
    sublane = max(8, 32 // max(1, itemsize))          # 8 f32, 16 bf16, 32 int8
    best = None
    for R in range(1, max(1, max_rows // max(1, B)) + 1):
        if F % R:
            continue
        rows, cols = B * R, F // R
        key = (cols % 128 == 0, rows % sublane == 0, -rows)
        if best is None or key > best[0]:
            best = (key, R, rows, cols)
    _, R, rows, cols = best
    return R, rows, cols


def _choose_tile_cols(cols, rows, itemsize, budget_bytes):
    """Largest lane-multiple tile width with rows*tile_cols*itemsize <= budget."""
    cap = max(128, (budget_bytes // max(1, rows * itemsize)) // 128 * 128)
    if cols <= cap:
        return cols                                   # one full-width tile
    best_div = 0
    for k in range(cap // 128, 0, -1):
        if cols % (128 * k) == 0:
            best_div = 128 * k
            break
    if best_div * 2 >= cap:                           # exact divisor, no tail
        return best_div
    return cap                                        # ragged tail: mask in-kernel


# ---------------------------------------------------------------- kernel ----

def _make_aei_kernel(ns, tile_cols, cols, rows, mask_needed):
    def kernel(x_ref, y_ref, srows_ref, zax_ref, zay_ref, attw_ref,
               zidx_ref, zidy_ref, att_ref, id_ref, rec_ref, acc_ref):
        i = pl.program_id(1)
        last = pl.num_programs(1) - 1

        # -- first step of this core: zero accumulator, small resident terms --
        @pl.when(i == 0)
        def _():
            acc_ref[...] = jnp.zeros_like(acc_ref)

            # attribute loss: sum_i mean((zx_i - zy_i)^2); per-column weights
            # carry 1/numel_i (0 on padded lanes), so no per-attribute slicing.
            dz = (zax_ref[...].astype(jnp.float32)
                  - zay_ref[...].astype(jnp.float32))
            att = jnp.sum(dz * dz * attw_ref[...].astype(jnp.float32),
                          keepdims=True)
            att_ref[...] = jnp.broadcast_to(att, att_ref.shape)

            # identity loss numerator: sum_b |1 - <z_id_X[b], z_id_Y[b]>|
            ip = jnp.sum(zidx_ref[...].astype(jnp.float32)
                         * zidy_ref[...].astype(jnp.float32),
                         axis=1, keepdims=True)                    # (B, 1)
            idv = jnp.sum(jnp.abs(1.0 - ip), keepdims=True)
            id_ref[...] = jnp.broadcast_to(idv, id_ref.shape)

        # -- every step: streamed squared-diff, reduced to a single column ----
        d = x_ref[...].astype(jnp.float32) - y_ref[...].astype(jnp.float32)
        if mask_needed:
            c = pl.program_id(0)
            col = ((c * ns + i) * tile_cols
                   + lax.broadcasted_iota(jnp.int32, (rows, tile_cols), 1))
            d = jnp.where(col < cols, d, 0.0)
        acc_ref[...] += jnp.sum(d * d, axis=-1, keepdims=True)     # (rows, 1)

        # -- last step of this core: per-row same^2 mask, partial rec sum -----
        @pl.when(i == last)
        def _():
            s = srows_ref[...].astype(jnp.float32)                 # (rows, 1)
            rec = jnp.sum(acc_ref[...] * (s * s), keepdims=True)
            rec_ref[...] = jnp.broadcast_to(rec, rec_ref.shape)

    return kernel


# --------------------------------------------------------------- wrapper ----

def aei_loss(X, Y, z_att_X, z_att_Y, z_id_X, z_id_Y, same, *,
             max_tile_bytes=2 * 1024 * 1024, num_cores=2):
    att_weight, id_weight, rec_weight = 10.0, 5.0, 10.0
    z_att_X = list(z_att_X)[:5]
    z_att_Y = list(z_att_Y)[:5]

    B = X.shape[0]
    F = math.prod(X.shape[1:])
    itemsize = X.dtype.itemsize

    # Sublane-dense, copy-free reshape of the streamed reconstruction term.
    R, rows, cols = _choose_row_split(B, F, itemsize)
    X2 = X.reshape(rows, cols)
    Y2 = Y.reshape(rows, cols)

    tile_cols = _choose_tile_cols(cols, rows, itemsize, max_tile_bytes)
    n_tiles = (cols + tile_cols - 1) // tile_cols
    mask_needed = (n_tiles * tile_cols != cols)

    nc = num_cores if (n_tiles % num_cores == 0 and n_tiles >= num_cores) else 1
    ns = n_tiles // nc
    grid = (nc, ns)

    # Per-row same mask (sample b owns rows [b*R, (b+1)*R)).
    same_rows = jnp.repeat(same.reshape(B, 1).astype(jnp.float32), R, axis=0)

    # Concatenated resident attribute features + per-column 1/numel weights.
    # TODO(synk): for full-resolution AEI-Net attribute maps (multi-MiB), the
    # attribute term should get its own streamed grid axis instead of being
    # fully VMEM-resident.
    zax_cat = jnp.concatenate([z.reshape(B, -1) for z in z_att_X], axis=1)
    zay_cat = jnp.concatenate([z.reshape(B, -1) for z in z_att_Y], axis=1)
    A = zax_cat.shape[1]
    A_pad = _round_up(A, 128)
    attw = jnp.concatenate(
        [jnp.full((int(z.size) // B,), 1.0 / float(z.size), jnp.float32)
         for z in z_att_X])
    if A_pad != A:
        pad = A_pad - A
        zax_cat = jnp.pad(zax_cat, ((0, 0), (0, pad)))
        zay_cat = jnp.pad(zay_cat, ((0, 0), (0, pad)))
        attw = jnp.pad(attw, (0, pad))
    attw = attw.reshape(1, A_pad)

    D = z_id_X.shape[-1]
    zidx = z_id_X.reshape(B, D)
    zidy = z_id_Y.reshape(B, D)

    kernel = _make_aei_kernel(ns, tile_cols, cols, rows, mask_needed)

    def resident(shape):
        return pl.BlockSpec(shape, lambda c, i: (0, 0))

    stream_spec = pl.BlockSpec((rows, tile_cols), lambda c, i: (0, c * ns + i))
    in_specs = [
        stream_spec,                 # X tiles (streamed, double-buffered)
        stream_spec,                 # Y tiles (streamed, double-buffered)
        resident((rows, 1)),         # per-row same mask
        resident((B, A_pad)),        # concatenated attribute feats (X)
        resident((B, A_pad)),        # concatenated attribute feats (Y)
        resident((1, A_pad)),        # per-column 1/numel weights
        resident((B, D)),            # z_id_X
        resident((B, D)),            # z_id_Y
    ]
    out_block = pl.BlockSpec((8, 128), lambda c, i: (0, c))
    out_specs = (out_block, out_block, out_block)
    out_shape = tuple(jax.ShapeDtypeStruct((8, nc * 128), jnp.float32)
                      for _ in range(3))

    small_bytes = int(zax_cat.size * zax_cat.dtype.itemsize
                      + zay_cat.size * zay_cat.dtype.itemsize
                      + attw.size * 4
                      + zidx.size * zidx.dtype.itemsize
                      + zidy.size * zidy.dtype.itemsize
                      + same_rows.size * 4)
    bytes_accessed = int(X2.size * itemsize + Y2.size * Y2.dtype.itemsize
                         + small_bytes + 3 * 8 * nc * 128 * 4)
    flops = int(3 * rows * cols + 3 * B * A_pad + 3 * B * D + 4 * B)
    cost = pl.CostEstimate(flops=flops, transcendentals=0,
                           bytes_accessed=bytes_accessed)

    att_out, id_out, rec_out = pl.pallas_call(
        kernel,
        grid=grid,
        in_specs=in_specs,
        out_specs=out_specs,
        out_shape=out_shape,
        scratch_shapes=[pltpu.VMEM((rows, 1), jnp.float32)],
        compiler_params=pltpu.CompilerParams(
            dimension_semantics=("parallel", "arbitrary"),
            vmem_limit_bytes=32 * 1024 * 1024),
        cost_estimate=cost,
    )(X2, Y2, same_rows, zax_cat, zay_cat, attw, zidx, zidy)

    att_loss = 0.5 * att_out[0, 0]
    id_loss = id_out[0, 0] / B
    rec_loss = 0.5 * jnp.sum(rec_out[0, ::128]) / (B * F)   # sum of per-core partials

    total = (att_weight * att_loss + id_weight * id_loss
             + rec_weight * rec_loss)
    return total, att_loss, id_loss, rec_loss


# ------------------------------------------------------------------- main ---

if __name__ == "__main__":
    key = jax.random.PRNGKey(0)
    ks = jax.random.split(key, 16)

    B, C, H, W, D = 2, 8, 16, 16, 32
    X = jax.random.normal(ks[0], (B, C, H, W), jnp.float32)
    Y = jax.random.normal(ks[1], (B, C, H, W), jnp.float32)

    # 5 multi-scale attribute feature maps (synthetic shapes, NCHW)
    att_shapes = [(B, 4, 16, 16), (B, 8, 8, 8), (B, 16, 4, 4),
                  (B, 16, 2, 2), (B, 32, 1, 1)]
    z_att_X = [jax.random.normal(ks[2 + i], s, jnp.float32)
               for i, s in enumerate(att_shapes)]
    z_att_Y = [jax.random.normal(ks[7 + i], s, jnp.float32)
               for i, s in enumerate(att_shapes)]

    z_id_X = jax.random.normal(ks[12], (B, D), jnp.float32)
    z_id_Y = jax.random.normal(ks[13], (B, D), jnp.float32)
    same = jax.random.bernoulli(ks[14], 0.5, (B, 1)).astype(jnp.float32)

    # Small max_tile_bytes so the demo exercises the multi-step streamed
    # accumulator AND the 2-way core split (grid (2, 2)); production sizes
    # use the 2 MiB default -> MiB-sized tiles.
    out = aei_loss(X, Y, z_att_X, z_att_Y, z_id_X, z_id_Y, same,
                   max_tile_bytes=4096)
    out = jax.block_until_ready(out)

    # pure-JAX reference (mirrors the PyTorch semantics) for a sanity check
    def ref():
        att = 0.0
        for zx, zy in zip(z_att_X, z_att_Y):
            att = att + jnp.mean((zx - zy) ** 2)
        att_l = 0.5 * att
        ip = jnp.einsum("bd,bd->b", z_id_X, z_id_Y)
        id_l = jnp.mean(jnp.abs(1.0 - ip))
        s = same.reshape(B, 1, 1, 1)
        rec_l = 0.5 * jnp.mean(((X - Y) * s) ** 2)
        return (10.0 * att_l + 5.0 * id_l + 10.0 * rec_l, att_l, id_l, rec_l)

    ref_out = ref()
    for got, want in zip(out, ref_out):
        assert jnp.allclose(got, want, rtol=1e-5, atol=1e-5), (got, want)

    print("KERNEL_OK")
</pallas_src>

<mosaic_0001>
module attributes {stable_mosaic.version = 11 : i64} {
  func.func @kernel(%arg0: i32, %arg1: i32, %arg2: memref<8x128xf32, #tpu.memory_space<vmem>>, %arg3: memref<8x128xf32, #tpu.memory_space<vmem>>, %arg4: memref<8x1xf32, #tpu.memory_space<vmem>>, %arg5: memref<2x1920xf32, #tpu.memory_space<vmem>>, %arg6: memref<2x1920xf32, #tpu.memory_space<vmem>>, %arg7: memref<1x1920xf32, #tpu.memory_space<vmem>>, %arg8: memref<2x32xf32, #tpu.memory_space<vmem>>, %arg9: memref<2x32xf32, #tpu.memory_space<vmem>>, %arg10: memref<8x128xf32, #tpu.memory_space<vmem>>, %arg11: memref<8x128xf32, #tpu.memory_space<vmem>>, %arg12: memref<8x128xf32, #tpu.memory_space<vmem>>, %arg13: memref<8x1xf32, #tpu.memory_space<vmem>>) attributes {dimension_semantics = [#tpu.dimension_semantics<parallel>, #tpu.dimension_semantics<arbitrary>], iteration_bounds = array<i64: 2, 2>, scalar_prefetch = 0 : i64, scratch_operands = 1 : i64, tpu.core_type = #tpu.core_type<tc>, window_params = [{transform_indices = @transform_0, window_bounds = array<i64: 8, 128>}, {transform_indices = @transform_1, window_bounds = array<i64: 8, 128>}, {pipeline_mode = #tpu.pipeline_mode<synchronous>, transform_indices = @transform_2, window_bounds = array<i64: 8, 1>}, {pipeline_mode = #tpu.pipeline_mode<synchronous>, transform_indices = @transform_3, window_bounds = array<i64: 2, 1920>}, {pipeline_mode = #tpu.pipeline_mode<synchronous>, transform_indices = @transform_4, window_bounds = array<i64: 2, 1920>}, {pipeline_mode = #tpu.pipeline_mode<synchronous>, transform_indices = @transform_5, window_bounds = array<i64: 1, 1920>}, {pipeline_mode = #tpu.pipeline_mode<synchronous>, transform_indices = @transform_6, window_bounds = array<i64: 2, 32>}, {pipeline_mode = #tpu.pipeline_mode<synchronous>, transform_indices = @transform_7, window_bounds = array<i64: 2, 32>}, {transform_indices = @transform_8, window_bounds = array<i64: 8, 128>}, {transform_indices = @transform_9, window_bounds = array<i64: 8, 128>}, {transform_indices = @transform_10, window_bounds = array<i64: 8, 128>}]} {
    %c0_i32 = arith.constant 0 : i32
    %0 = arith.cmpi eq, %arg1, %c0_i32 : i32
    %1 = arith.extui %0 : i1 to i32
    %c0_i32_0 = arith.constant 0 : i32
    %2 = arith.cmpi ne, %1, %c0_i32_0 : i32
    scf.if %2 {
      %cst_9 = arith.constant 0.000000e+00 : f32
      %15 = vector.broadcast %cst_9 : f32 to vector<8x1xf32>
      %c0_10 = arith.constant 0 : index
      %c0_11 = arith.constant 0 : index
      %16 = vector.load %arg13[%c0_10, %c0_11] : memref<8x1xf32, #tpu.memory_space<vmem>>, vector<8x1xf32>
      tpu.vector_store %arg13[%c0_10, %c0_11], %15 {strides = array<i32>} : memref<8x1xf32, #tpu.memory_space<vmem>>, vector<8x1xf32>,
      %c0_12 = arith.constant 0 : index
      %c0_13 = arith.constant 0 : index
      %17 = vector.load %arg5[%c0_12, %c0_13] : memref<2x1920xf32, #tpu.memory_space<vmem>>, vector<2x1920xf32>
      %c0_14 = arith.constant 0 : index
      %c0_15 = arith.constant 0 : index
      %18 = vector.load %arg6[%c0_14, %c0_15] : memref<2x1920xf32, #tpu.memory_space<vmem>>, vector<2x1920xf32>
      %19 = arith.subf %17, %18 : vector<2x1920xf32>
      %20 = arith.mulf %19, %19 : vector<2x1920xf32>
      %c0_16 = arith.constant 0 : index
      %c0_17 = arith.constant 0 : index
      %21 = vector.load %arg7[%c0_16, %c0_17] : memref<1x1920xf32, #tpu.memory_space<vmem>>, vector<1x1920xf32>
      %22 = vector.broadcast %21 : vector<1x1920xf32> to vector<2x1920xf32>
      %23 = arith.mulf %20, %22 : vector<2x1920xf32>
      %24 = vector.shape_cast %23 : vector<2x1920xf32> to vector<1x2x1920xf32>
      %cst_18 = arith.constant dense<0.000000e+00> : vector<1xf32>
      %25 = vector.multi_reduction <add>, %24, %cst_18 [1, 2] : vector<1x2x1920xf32> to vector<1xf32>
      %26 = vector.shape_cast %25 : vector<1xf32> to vector<1x1x1xf32>
      %27 = vector.extract %26[0, 0, 0] : f32 from vector<1x1x1xf32>
      %28 = vector.broadcast %27 : f32 to vector<1x1xf32>
      %29 = vector.shape_cast %28 : vector<1x1xf32> to vector<1x1xf32>
      %30 = vector.broadcast %29 : vector<1x1xf32> to vector<8x128xf32>
      %c0_19 = arith.constant 0 : index
      %c0_20 = arith.constant 0 : index
      %31 = vector.load %arg10[%c0_19, %c0_20] : memref<8x128xf32, #tpu.memory_space<vmem>>, vector<8x128xf32>
      tpu.vector_store %arg10[%c0_19, %c0_20], %30 {strides = array<i32>} : memref<8x128xf32, #tpu.memory_space<vmem>>, vector<8x128xf32>,
      %c0_21 = arith.constant 0 : index
      %c0_22 = arith.constant 0 : index
      %32 = vector.load %arg8[%c0_21, %c0_22] : memref<2x32xf32, #tpu.memory_space<vmem>>, vector<2x32xf32>
      %c0_23 = arith.constant 0 : index
      %c0_24 = arith.constant 0 : index
      %33 = vector.load %arg9[%c0_23, %c0_24] : memref<2x32xf32, #tpu.memory_space<vmem>>, vector<2x32xf32>
      %34 = arith.mulf %32, %33 : vector<2x32xf32>
      %cst_25 = arith.constant dense<0.000000e+00> : vector<2xf32>
      %35 = vector.multi_reduction <add>, %34, %cst_25 [1] : vector<2x32xf32> to vector<2xf32>
      %36 = vector.shape_cast %35 : vector<2xf32> to vector<2x1xf32>
      %cst_26 = arith.constant 1.000000e+00 : f32
      %37 = vector.broadcast %cst_26 : f32 to vector<2x1xf32>
      %38 = arith.subf %37, %36 : vector<2x1xf32>
      %39 = math.absf %38 : vector<2x1xf32>
      %40 = vector.shape_cast %39 : vector<2x1xf32> to vector<1x2x1xf32>
      %cst_27 = arith.constant dense<0.000000e+00> : vector<1xf32>
      %41 = vector.multi_reduction <add>, %40, %cst_27 [1, 2] : vector<1x2x1xf32> to vector<1xf32>
      %42 = vector.shape_cast %41 : vector<1xf32> to vector<1x1x1xf32>
      %43 = vector.extract %42[0, 0, 0] : f32 from vector<1x1x1xf32>
      %44 = vector.broadcast %43 : f32 to vector<1x1xf32>
      %45 = vector.shape_cast %44 : vector<1x1xf32> to vector<1x1xf32>
      %46 = vector.broadcast %45 : vector<1x1xf32> to vector<8x128xf32>
      %c0_28 = arith.constant 0 : index
      %c0_29 = arith.constant 0 : index
      %47 = vector.load %arg11[%c0_28, %c0_29] : memref<8x128xf32, #tpu.memory_space<vmem>>, vector<8x128xf32>
      tpu.vector_store %arg11[%c0_28, %c0_29], %46 {strides = array<i32>} : memref<8x128xf32, #tpu.memory_space<vmem>>, vector<8x128xf32>,
    } else {
    }
    %c0 = arith.constant 0 : index
    %c0_1 = arith.constant 0 : index
    %3 = vector.load %arg2[%c0, %c0_1] : memref<8x128xf32, #tpu.memory_space<vmem>>, vector<8x128xf32>
    %c0_2 = arith.constant 0 : index
    %c0_3 = arith.constant 0 : index
    %4 = vector.load %arg3[%c0_2, %c0_3] : memref<8x128xf32, #tpu.memory_space<vmem>>, vector<8x128xf32>
    %5 = arith.subf %3, %4 : vector<8x128xf32>
    %c0_4 = arith.constant 0 : index
    %c0_5 = arith.constant 0 : index
    %6 = vector.load %arg13[%c0_4, %c0_5] : memref<8x1xf32, #tpu.memory_space<vmem>>, vector<8x1xf32>
    %7 = arith.mulf %5, %5 : vector<8x128xf32>
    %cst = arith.constant dense<0.000000e+00> : vector<8xf32>
    %8 = vector.multi_reduction <add>, %7, %cst [1] : vector<8x128xf32> to vector<8xf32>
    %9 = vector.shape_cast %8 : vector<8xf32> to vector<8x1xf32>
    %10 = arith.addf %6, %9 : vector<8x1xf32>
    %c0_6 = arith.constant 0 : index
    %c0_7 = arith.constant 0 : index
    %11 = vector.load %arg13[%c0_6, %c0_7] : memref<8x1xf32, #tpu.memory_space<vmem>>, vector<8x1xf32>
    tpu.vector_store %arg13[%c0_6, %c0_7], %10 {strides = array<i32>} : memref<8x1xf32, #tpu.memory_space<vmem>>, vector<8x1xf32>,
    %c1_i32 = arith.constant 1 : i32
    %12 = arith.cmpi eq, %arg1, %c1_i32 : i32
    %13 = arith.extui %12 : i1 to i32
    %c0_i32_8 = arith.constant 0 : i32
    %14 = arith.cmpi ne, %13, %c0_i32_8 : i32
    scf.if %14 {
      %c0_9 = arith.constant 0 : index
      %c0_10 = arith.constant 0 : index
      %15 = vector.load %arg4[%c0_9, %c0_10] : memref<8x1xf32, #tpu.memory_space<vmem>>, vector<8x1xf32>
      %c0_11 = arith.constant 0 : index
      %c0_12 = arith.constant 0 : index
      %16 = vector.load %arg13[%c0_11, %c0_12] : memref<8x1xf32, #tpu.memory_space<vmem>>, vector<8x1xf32>
      %17 = arith.mulf %15, %15 : vector<8x1xf32>
      %18 = arith.mulf %16, %17 : vector<8x1xf32>
      %19 = vector.shape_cast %18 : vector<8x1xf32> to vector<1x8x1xf32>
      %cst_13 = arith.constant dense<0.000000e+00> : vector<1xf32>
      %20 = vector.multi_reduction <add>, %19, %cst_13 [1, 2] : vector<1x8x1xf32> to vector<1xf32>
      %21 = vector.shape_cast %20 : vector<1xf32> to vector<1x1x1xf32>
      %22 = vector.extract %21[0, 0, 0] : f32 from vector<1x1x1xf32>
      %23 = vector.broadcast %22 : f32 to vector<1x1xf32>
      %24 = vector.shape_cast %23 : vector<1x1xf32> to vector<1x1xf32>
      %25 = vector.broadcast %24 : vector<1x1xf32> to vector<8x128xf32>
      %c0_14 = arith.constant 0 : index
      %c0_15 = arith.constant 0 : index
      %26 = vector.load %arg12[%c0_14, %c0_15] : memref<8x128xf32, #tpu.memory_space<vmem>>, vector<8x128xf32>
      tpu.vector_store %arg12[%c0_14, %c0_15], %25 {strides = array<i32>} : memref<8x128xf32, #tpu.memory_space<vmem>>, vector<8x128xf32>,
    } else {
    }
    return
  }
  func.func @transform_0(%arg0: i32, %arg1: i32) -> (i32, i32) {
    %c2_i32 = arith.constant 2 : i32
    %0 = arith.muli %arg0, %c2_i32 : i32
    %1 = arith.addi %0, %arg1 : i32
    %c0_i32 = arith.constant 0 : i32
    %c0_i32_0 = arith.constant 0 : i32
    return %c0_i32, %1 : i32, i32
  }
  func.func @transform_1(%arg0: i32, %arg1: i32) -> (i32, i32) {
    %c2_i32 = arith.constant 2 : i32
    %0 = arith.muli %arg0, %c2_i32 : i32
    %1 = arith.addi %0, %arg1 : i32
    %c0_i32 = arith.constant 0 : i32
    %c0_i32_0 = arith.constant 0 : i32
    return %c0_i32, %1 : i32, i32
  }
  func.func @transform_2(%arg0: i32, %arg1: i32) -> (i32, i32) {
    %c0_i32 = arith.constant 0 : i32
    %c0_i32_0 = arith.constant 0 : i32
    %c0_i32_1 = arith.constant 0 : i32
    return %c0_i32, %c0_i32_0 : i32, i32
  }
  func.func @transform_3(%arg0: i32, %arg1: i32) -> (i32, i32) {
    %c0_i32 = arith.constant 0 : i32
    %c0_i32_0 = arith.constant 0 : i32
    %c0_i32_1 = arith.constant 0 : i32
    return %c0_i32, %c0_i32_0 : i32, i32
  }
  func.func @transform_4(%arg0: i32, %arg1: i32) -> (i32, i32) {
    %c0_i32 = arith.constant 0 : i32
    %c0_i32_0 = arith.constant 0 : i32
    %c0_i32_1 = arith.constant 0 : i32
    return %c0_i32, %c0_i32_0 : i32, i32
  }
  func.func @transform_5(%arg0: i32, %arg1: i32) -> (i32, i32) {
    %c0_i32 = arith.constant 0 : i32
    %c0_i32_0 = arith.constant 0 : i32
    %c0_i32_1 = arith.constant 0 : i32
    return %c0_i32, %c0_i32_0 : i32, i32
  }
  func.func @transform_6(%arg0: i32, %arg1: i32) -> (i32, i32) {
    %c0_i32 = arith.constant 0 : i32
    %c0_i32_0 = arith.constant 0 : i32
    %c0_i32_1 = arith.constant 0 : i32
    return %c0_i32, %c0_i32_0 : i32, i32
  }
  func.func @transform_7(%arg0: i32, %arg1: i32) -> (i32, i32) {
    %c0_i32 = arith.constant 0 : i32
    %c0_i32_0 = arith.constant 0 : i32
    %c0_i32_1 = arith.constant 0 : i32
    return %c0_i32, %c0_i32_0 : i32, i32
  }
  func.func @transform_8(%arg0: i32, %arg1: i32) -> (i32, i32) {
    %c0_i32 = arith.constant 0 : i32
    %c0_i32_0 = arith.constant 0 : i32
    return %c0_i32, %arg0 : i32, i32
  }
  func.func @transform_9(%arg0: i32, %arg1: i32) -> (i32, i32) {
    %c0_i32 = arith.constant 0 : i32
    %c0_i32_0 = arith.constant 0 : i32
    return %c0_i32, %arg0 : i32, i32
  }
  func.func @transform_10(%arg0: i32, %arg1: i32) -> (i32, i32) {
    %c0_i32 = arith.constant 0 : i32
    %c0_i32_0 = arith.constant 0 : i32
    return %c0_i32, %arg0 : i32, i32
  }
}

</mosaic_0001>

<llo_original>
// kernel: tpu_custom_call.1
$region0: #{tpu_custom_call.1}
  #allocation0 [shape = 'u32[]', space=smem, size = 0x4, offset = 0x4, fixed_abs, tag = 'smem constant byte address 0x4 - core index']
  #allocation1 [shape = 'u32[144,128]{1,0:T(1,128)}', space=vmem, size = 0x12000, scoped, tag = 'internal scratch']
  #allocation2 [shape = 'f32[8,1]{1,0:T(8,128)}', space=vmem, size = 0x1000, scoped, tag = 'scratch operand']
  %s0 = inlined_call_operand.hbm [shape: f32[8,512], index: 0, kind: input, shape index: {}]
  %s1 = inlined_call_operand.hbm [shape: f32[8,512], index: 1, kind: input, shape index: {}]
  %s2 = inlined_call_operand.vmem [shape: f32[8,1], index: 2, kind: input, shape index: {}]
  %s3 = inlined_call_operand.hbm [shape: f32[2,1920], index: 3, kind: input, shape index: {}]
  %s4 = inlined_call_operand.hbm [shape: f32[2,1920], index: 4, kind: input, shape index: {}]
  %s5 = inlined_call_operand.vmem [shape: f32[1,1920], index: 5, kind: input, shape index: {}]
  %s6 = inlined_call_operand.vmem [shape: f32[2,32], index: 6, kind: input, shape index: {}]
  %s7 = inlined_call_operand.vmem [shape: f32[2,32], index: 7, kind: input, shape index: {}]
  %s8 = inlined_call_operand.hbm [shape: f32[8,256], index: 8, kind: output, shape index: {0}]
  %s9 = inlined_call_operand.hbm [shape: f32[8,256], index: 9, kind: output, shape index: {1}]
  %s10 = inlined_call_operand.hbm [shape: f32[8,256], index: 10, kind: output, shape index: {2}]
  %11 = xla_tuple %s8, %s9, %s10
  %s12 = sld [smem:[#allocation0]]
  $region105: #{tpu_custom_call.1} parent=0
    _
  %s14 = ssub.s32 1, %s12
  %s15 = scalar_select 0, %s14, %s12
  $region1: #{tpu_custom_call.1} parent=0
    #allocation3 [shape = 'u8[8192]{0}', space=vmem, size = 0x2000, scoped, tag = 'input window, operand 0']
    #allocation4 [shape = 's32[2]{0}', space=sflag, size = 0x8, scoped, tag = 'scoped memory for tpu_custom_call.1']
    #allocation5 [shape = 's32[2]{0}', space=sflag, size = 0x8, scoped, tag = 'scoped memory for tpu_custom_call.1']
    #allocation6 [shape = 'u8[8192]{0}', space=vmem, size = 0x2000, scoped, tag = 'input window, operand 1']
    #allocation7 [shape = 's32[2]{0}', space=sflag, size = 0x8, scoped, tag = 'scoped memory for tpu_custom_call.1']
    #allocation8 [shape = 'u8[15360]{0}', space=vmem, size = 0x3c00, scoped, tag = 'input window, operand 3, single buffered']
    #allocation9 [shape = 'u8[15360]{0}', space=vmem, size = 0x3c00, scoped, tag = 'input window, operand 4, single buffered']
    #allocation10 [shape = 's32[1]{0}', space=sflag, size = 0x4, scoped, tag = 'scoped memory for tpu_custom_call.1']
    #allocation11 [shape = 'u8[8192]{0}', space=vmem, size = 0x2000, scoped, tag = 'output window, operand 0']
    #allocation12 [shape = 'u8[8192]{0}', space=vmem, size = 0x2000, scoped, tag = 'output window, operand 1']
    #allocation13 [shape = 's32[2]{0}', space=sflag, size = 0x8, scoped, tag = 'scoped memory for tpu_custom_call.1']
    #allocation14 [shape = 'u8[8192]{0}', space=vmem, size = 0x2000, scoped, tag = 'output window, operand 2']
    %16 = vsyncpa [#allocation4], 0
    %s17 = scalar_lea.sflag [#allocation4], 1
    %18 = vsyncpa %s17, 0
    %19 = vsyncpa [#allocation7], 0
    %s20 = scalar_lea.sflag [#allocation7], 1
    %21 = vsyncpa %s20, 0
    %22 = vsyncpa [#allocation10], 0
    %23 = vsyncpa [#allocation5], 0
    %s24 = scalar_lea.sflag [#allocation5], 1
    %25 = vsyncpa %s24, 0
    %26 = vsyncpa [#allocation13], 0
    %s27 = scalar_lea.sflag [#allocation13], 1
    %28 = vsyncpa %s27, 0
    loop: start=0, step=1, limit=6
    $region2: #{tpu_custom_call.1} parent=1 // loop_pre_header
      _
    $region3: #{tpu_custom_call.1} parent=1 // loop_header
      %s30 = sphi 0, %s34
      %p31 = scmp.ge.s32.totalorder %s30, 6
      %s37 = sphi 0, %s49
      %s38 = sphi 0, %s45
      %s39 = sphi 0, %s37
      %s40 = sphi 0, %s38
      %s41 = sphi 0, %s39
      %s42 = sphi 0, %s40
      %s56 = sphi 0, %s58
      %s59 = sphi 0, %s56
      %s60 = sphi 0, %s59
      %s76 = sphi 0, %s60
      %s86 = sphi 0, %s88
      %s89 = sphi 0, %s86
      %s90 = sphi 0, %s89
      %s106 = sphi 0, %s90
      %s110 = sphi 0, %s110
      %s112 = sphi 0, %s110
      %s113 = sphi 0, %s112
      %s127 = sphi 0, %s113
      %s131 = sphi 0, %s131
      %s133 = sphi 0, %s131
      %s134 = sphi 0, %s133
      %s148 = sphi 0, %s134
      %s152 = sphi 0, %s152
      %s154 = sphi 0, %s152
      %s155 = sphi 0, %s154
      %s169 = sphi 0, %s155
      %s173 = sphi 0, %s173
      %s175 = sphi 0, %s173
      %s176 = sphi 0, %s175
      %s190 = sphi 0, %s176
      %s194 = sphi 0, %s194
      %s196 = sphi 0, %s194
      %s197 = sphi 0, %s196
      %s211 = sphi 0, %s197
      %s215 = sphi 0, %s215
      %s217 = sphi 0, %s215
      %s218 = sphi 0, %s217
      %s232 = sphi 0, %s218
      %s238 = sphi 0, %s240
      %s241 = sphi 0, %s238
      %s242 = sphi 0, %s241
      %s258 = sphi 0, %s242
      %s264 = sphi 0, %s266
      %s267 = sphi 0, %s264
      %s268 = sphi 0, %s267
      %s284 = sphi 0, %s268
      %s290 = sphi 0, %s292
      %s293 = sphi 0, %s290
      %s294 = sphi 0, %s293
      %s310 = sphi 0, %s294
    $region4: #{tpu_custom_call.1} parent=1 // loop_header_branch
      %33 = sbr.rel (%p31) target = $region8
    $region5: #{tpu_custom_call.1} parent=1 // loop_body
      %s35 = ssub.s32 %s30, 1
      %s36 = ssub.s32 %s30, 2
      %s43 = sadd.s32 1, %s38
      %p44 = scmp.ge.s32.totalorder %s43, 2
      %s45 = scalar_select %p44, 0, %s43
      %s46 = sadd.s32 1, %s37
      %s47 = scalar_select %p44, %s46, %s37
      %p48 = scmp.ge.s32.totalorder %s47, 2
      %s49 = scalar_select %p48, 0, %s47
      %s50 = smul.u32 %s37, 2
      %s51 = sadd.s32 %s50, %s38
      %s52 = smul.u32 %s49, 2
      %s53 = sadd.s32 %s52, %s45
      %s54 = ssub.s32 %s51, %s53
      %p55 = scmp.eq.s32.totalorder %s54, 0
      %s57 = sadd.s32 %s56, 1
      %s58 = scalar_select %p55, %s56, %s57
      %p61 = pneg %p55
      %p62 = scmp.eq.s32.totalorder %s30, 3
      %p63 = por %p61, %p62
      %p64 = scmp.ne.s32.totalorder %s56, %s59
      %p65 = scmp.eq.s32.totalorder %s30, 0
      %p66 = por %p64, %p65
      %p67 = scmp.ne.s32.totalorder %s56, %s59
      %p68 = scmp.eq.s32.totalorder %s35, 3
      %p69 = por %p67, %p68
      %p70 = scmp.ne.s32.totalorder %s59, %s60
      %p71 = scmp.eq.s32.totalorder %s35, 0
      %p72 = por %p70, %p71
      %p73 = scmp.ne.s32.totalorder %s59, %s60
      %p74 = scmp.eq.s32.totalorder %s36, 3
      %p75 = por %p73, %p74
      %p77 = scmp.ne.s32.totalorder %s60, %s76
      %p78 = scmp.eq.s32.totalorder %s36, 0
      %p79 = por %p77, %p78
      %s80 = smul.u32 %s37, 2
      %s81 = sadd.s32 %s80, %s38
      %s82 = smul.u32 %s49, 2
      %s83 = sadd.s32 %s82, %s45
      %s84 = ssub.s32 %s81, %s83
      %p85 = scmp.eq.s32.totalorder %s84, 0
      %s87 = sadd.s32 %s86, 1
      %s88 = scalar_select %p85, %s86, %s87
      %p91 = pneg %p85
      %p92 = scmp.eq.s32.totalorder %s30, 3
      %p93 = por %p91, %p92
      %p94 = scmp.ne.s32.totalorder %s86, %s89
      %p95 = scmp.eq.s32.totalorder %s30, 0
      %p96 = por %p94, %p95
      %p97 = scmp.ne.s32.totalorder %s86, %s89
      %p98 = scmp.eq.s32.totalorder %s35, 3
      %p99 = por %p97, %p98
      %p100 = scmp.ne.s32.totalorder %s89, %s90
      %p101 = scmp.eq.s32.totalorder %s35, 0
      %p102 = por %p100, %p101
      %p103 = scmp.ne.s32.totalorder %s89, %s90
      %p104 = scmp.eq.s32.totalorder %s36, 3
      %p105 = por %p103, %p104
      %p107 = scmp.ne.s32.totalorder %s90, %s106
      %p108 = scmp.eq.s32.totalorder %s36, 0
      %p109 = por %p107, %p108
      %s111 = sadd.s32 %s110, 1
      %p114 = scmp.eq.s32.totalorder %s30, 3
      %p115 = scmp.ne.s32.totalorder %s110, %s112
      %p116 = scmp.eq.s32.totalorder %s30, 0
      %p117 = por %p115, %p116
      %p118 = scmp.ne.s32.totalorder %s110, %s112
      %p119 = scmp.eq.s32.totalorder %s35, 3
      %p120 = por %p118, %p119
      %p121 = scmp.ne.s32.totalorder %s112, %s113
      %p122 = scmp.eq.s32.totalorder %s35, 0
      %p123 = por %p121, %p122
      %p124 = scmp.ne.s32.totalorder %s112, %s113
      %p125 = scmp.eq.s32.totalorder %s36, 3
      %p126 = por %p124, %p125
      %p128 = scmp.ne.s32.totalorder %s113, %s127
      %p129 = scmp.eq.s32.totalorder %s36, 0
      %p130 = por %p128, %p129
      %s132 = sadd.s32 %s131, 1
      %p135 = scmp.eq.s32.totalorder %s30, 3
      %p136 = scmp.ne.s32.totalorder %s131, %s133
      %p137 = scmp.eq.s32.totalorder %s30, 0
      %p138 = por %p136, %p137
      %p139 = scmp.ne.s32.totalorder %s131, %s133
      %p140 = scmp.eq.s32.totalorder %s35, 3
      %p141 = por %p139, %p140
      %p142 = scmp.ne.s32.totalorder %s133, %s134
      %p143 = scmp.eq.s32.totalorder %s35, 0
      %p144 = por %p142, %p143
      %p145 = scmp.ne.s32.totalorder %s133, %s134
      %p146 = scmp.eq.s32.totalorder %s36, 3
      %p147 = por %p145, %p146
      %p149 = scmp.ne.s32.totalorder %s134, %s148
      %p150 = scmp.eq.s32.totalorder %s36, 0
      %p151 = por %p149, %p150
      %s153 = sadd.s32 %s152, 1
      %p156 = scmp.eq.s32.totalorder %s30, 3
      %p157 = scmp.ne.s32.totalorder %s152, %s154
      %p158 = scmp.eq.s32.totalorder %s30, 0
      %p159 = por %p157, %p158
      %p160 = scmp.ne.s32.totalorder %s152, %s154
      %p161 = scmp.eq.s32.totalorder %s35, 3
      %p162 = por %p160, %p161
      %p163 = scmp.ne.s32.totalorder %s154, %s155
      %p164 = scmp.eq.s32.totalorder %s35, 0
      %p165 = por %p163, %p164
      %p166 = scmp.ne.s32.totalorder %s154, %s155
      %p167 = scmp.eq.s32.totalorder %s36, 3
      %p168 = por %p166, %p167
      %p170 = scmp.ne.s32.totalorder %s155, %s169
      %p171 = scmp.eq.s32.totalorder %s36, 0
      %p172 = por %p170, %p171
      %s174 = sadd.s32 %s173, 1
      %p177 = scmp.eq.s32.totalorder %s30, 3
      %p178 = scmp.ne.s32.totalorder %s173, %s175
      %p179 = scmp.eq.s32.totalorder %s30, 0
      %p180 = por %p178, %p179
      %p181 = scmp.ne.s32.totalorder %s173, %s175
      %p182 = scmp.eq.s32.totalorder %s35, 3
      %p183 = por %p181, %p182
      %p184 = scmp.ne.s32.totalorder %s175, %s176
      %p185 = scmp.eq.s32.totalorder %s35, 0
      %p186 = por %p184, %p185
      %p187 = scmp.ne.s32.totalorder %s175, %s176
      %p188 = scmp.eq.s32.totalorder %s36, 3
      %p189 = por %p187, %p188
      %p191 = scmp.ne.s32.totalorder %s176, %s190
      %p192 = scmp.eq.s32.totalorder %s36, 0
      %p193 = por %p191, %p192
      %s195 = sadd.s32 %s194, 1
      %p198 = scmp.eq.s32.totalorder %s30, 3
      %p199 = scmp.ne.s32.totalorder %s194, %s196
      %p200 = scmp.eq.s32.totalorder %s30, 0
      %p201 = por %p199, %p200
      %p202 = scmp.ne.s32.totalorder %s194, %s196
      %p203 = scmp.eq.s32.totalorder %s35, 3
      %p204 = por %p202, %p203
      %p205 = scmp.ne.s32.totalorder %s196, %s197
      %p206 = scmp.eq.s32.totalorder %s35, 0
      %p207 = por %p205, %p206
      %p208 = scmp.ne.s32.totalorder %s196, %s197
      %p209 = scmp.eq.s32.totalorder %s36, 3
      %p210 = por %p208, %p209
      %p212 = scmp.ne.s32.totalorder %s197, %s211
      %p213 = scmp.eq.s32.totalorder %s36, 0
      %p214 = por %p212, %p213
      %s216 = sadd.s32 %s215, 1
      %p219 = scmp.eq.s32.totalorder %s30, 3
      %p220 = scmp.ne.s32.totalorder %s215, %s217
      %p221 = scmp.eq.s32.totalorder %s30, 0
      %p222 = por %p220, %p221
      %p223 = scmp.ne.s32.totalorder %s215, %s217
      %p224 = scmp.eq.s32.totalorder %s35, 3
      %p225 = por %p223, %p224
      %p226 = scmp.ne.s32.totalorder %s217, %s218
      %p227 = scmp.eq.s32.totalorder %s35, 0
      %p228 = por %p226, %p227
      %p229 = scmp.ne.s32.totalorder %s217, %s218
      %p230 = scmp.eq.s32.totalorder %s36, 3
      %p231 = por %p229, %p230
      %p233 = scmp.ne.s32.totalorder %s218, %s232
      %p234 = scmp.eq.s32.totalorder %s36, 0
      %p235 = por %p233, %p234
      %s236 = ssub.s32 %s37, %s49
      %p237 = scmp.eq.s32.totalorder %s236, 0
      %s239 = sadd.s32 %s238, 1
      %s240 = scalar_select %p237, %s238, %s239
      %p243 = pneg %p237
      %p244 = scmp.eq.s32.totalorder %s30, 3
      %p245 = por %p243, %p244
      %p246 = scmp.ne.s32.totalorder %s238, %s241
      %p247 = scmp.eq.s32.totalorder %s30, 0
      %p248 = por %p246, %p247
      %p249 = scmp.ne.s32.totalorder %s238, %s241
      %p250 = scmp.eq.s32.totalorder %s35, 3
      %p251 = por %p249, %p250
      %p252 = scmp.ne.s32.totalorder %s241, %s242
      %p253 = scmp.eq.s32.totalorder %s35, 0
      %p254 = por %p252, %p253
      %p255 = scmp.ne.s32.totalorder %s241, %s242
      %p256 = scmp.eq.s32.totalorder %s36, 3
      %p257 = por %p255, %p256
      %p259 = scmp.ne.s32.totalorder %s242, %s258
      %p260 = scmp.eq.s32.totalorder %s36, 0
      %p261 = por %p259, %p260
      %s262 = ssub.s32 %s37, %s49
      %p263 = scmp.eq.s32.totalorder %s262, 0
      %s265 = sadd.s32 %s264, 1
      %s266 = scalar_select %p263, %s264, %s265
      %p269 = pneg %p263
      %p270 = scmp.eq.s32.totalorder %s30, 3
      %p271 = por %p269, %p270
      %p272 = scmp.ne.s32.totalorder %s264, %s267
      %p273 = scmp.eq.s32.totalorder %s30, 0
      %p274 = por %p272, %p273
      %p275 = scmp.ne.s32.totalorder %s264, %s267
      %p276 = scmp.eq.s32.totalorder %s35, 3
      %p277 = por %p275, %p276
      %p278 = scmp.ne.s32.totalorder %s267, %s268
      %p279 = scmp.eq.s32.totalorder %s35, 0
      %p280 = por %p278, %p279
      %p281 = scmp.ne.s32.totalorder %s267, %s268
      %p282 = scmp.eq.s32.totalorder %s36, 3
      %p283 = por %p281, %p282
      %p285 = scmp.ne.s32.totalorder %s268, %s284
      %p286 = scmp.eq.s32.totalorder %s36, 0
      %p287 = por %p285, %p286
      %s288 = ssub.s32 %s37, %s49
      %p289 = scmp.eq.s32.totalorder %s288, 0
      %s291 = sadd.s32 %s290, 1
      %s292 = scalar_select %p289, %s290, %s291
      %p295 = pneg %p289
      %p296 = scmp.eq.s32.totalorder %s30, 3
      %p297 = por %p295, %p296
      %p298 = scmp.ne.s32.totalorder %s290, %s293
      %p299 = scmp.eq.s32.totalorder %s30, 0
      %p300 = por %p298, %p299
      %p301 = scmp.ne.s32.totalorder %s290, %s293
      %p302 = scmp.eq.s32.totalorder %s35, 3
      %p303 = por %p301, %p302
      %p304 = scmp.ne.s32.totalorder %s293, %s294
      %p305 = scmp.eq.s32.totalorder %s35, 0
      %p306 = por %p304, %p305
      %p307 = scmp.ne.s32.totalorder %s293, %s294
      %p308 = scmp.eq.s32.totalorder %s36, 3
      %p309 = por %p307, %p308
      %p311 = scmp.ne.s32.totalorder %s294, %s310
      %p312 = scmp.eq.s32.totalorder %s36, 0
      %p313 = por %p311, %p312
      %p314 = scmp.le.s32.totalorder 1, %s30
      %p315 = scmp.lt.s32.totalorder %s30, 5
      %p316 = pnand %p314, %p315
      %p317 = pneg %p316
      // Predicated region
      $region9: #{tpu_custom_call.1} parent=5 // pred_check
        _
      $region10: #{tpu_custom_call.1} parent=5 // pred_check_branch
        %319 = sbr.rel (%p316) target = $region12
      $region11: #{tpu_custom_call.1} parent=5 // pred_region
        %s320 = ssub.s32 %s30, 1
        // Predicated region
        $region13: #{tpu_custom_call.1} parent=11 // pred_check
          %p321 = pneg %p123
        $region14: #{tpu_custom_call.1} parent=11 // pred_check_branch
          %323 = sbr.rel (%p321) target = $region16
        $region15: #{tpu_custom_call.1} parent=11 // pred_region
          _
        $region16: #{tpu_custom_call.1} parent=11 // pred_fallthru
          _
        // Predicated region
        $region17: #{tpu_custom_call.1} parent=11 // pred_check
          %p324 = pneg %p144
        $region18: #{tpu_custom_call.1} parent=11 // pred_check_branch
          %326 = sbr.rel (%p324) target = $region20
        $region19: #{tpu_custom_call.1} parent=11 // pred_region
          %s328 = ssub.s32 480, 480
          %329 = vsyncadd [#allocation7], %s328
          %s331 = sshll.u32 [#allocation8], 4
          %s332 = int_to_ptr.vmem [resolvable:$true] %s331
          %334 = dma.hbm_to_vmem [thread:$0]  %s3, 480, %s332, [#allocation7]
        $region20: #{tpu_custom_call.1} parent=11 // pred_fallthru
          _
        // Predicated region
        $region21: #{tpu_custom_call.1} parent=11 // pred_check
          %p335 = pneg %p165
        $region22: #{tpu_custom_call.1} parent=11 // pred_check_branch
          %337 = sbr.rel (%p335) target = $region24
        $region23: #{tpu_custom_call.1} parent=11 // pred_region
          %s339 = ssub.s32 480, 480
          %340 = vsyncadd [#allocation10], %s339
          %s342 = sshll.u32 [#allocation9], 4
          %s343 = int_to_ptr.vmem [resolvable:$true] %s342
          %345 = dma.hbm_to_vmem [thread:$0]  %s4, 480, %s343, [#allocation10]
        $region24: #{tpu_custom_call.1} parent=11 // pred_fallthru
          _
        // Predicated region
        $region25: #{tpu_custom_call.1} parent=11 // pred_check
          %p346 = pneg %p186
        $region26: #{tpu_custom_call.1} parent=11 // pred_check_branch
          %348 = sbr.rel (%p346) target = $region28
        $region27: #{tpu_custom_call.1} parent=11 // pred_region
          _
        $region28: #{tpu_custom_call.1} parent=11 // pred_fallthru
          _
        // Predicated region
        $region29: #{tpu_custom_call.1} parent=11 // pred_check
          %p349 = pneg %p207
        $region30: #{tpu_custom_call.1} parent=11 // pred_check_branch
          %351 = sbr.rel (%p349) target = $region32
        $region31: #{tpu_custom_call.1} parent=11 // pred_region
          _
        $region32: #{tpu_custom_call.1} parent=11 // pred_fallthru
          _
        // Predicated region
        $region33: #{tpu_custom_call.1} parent=11 // pred_check
          %p352 = pneg %p228
        $region34: #{tpu_custom_call.1} parent=11 // pred_check_branch
          %354 = sbr.rel (%p352) target = $region36
        $region35: #{tpu_custom_call.1} parent=11 // pred_region
          _
        $region36: #{tpu_custom_call.1} parent=11 // pred_fallthru
          _
      $region12: #{tpu_custom_call.1} parent=5 // pred_fallthru
        _
      %p355 = scmp.lt.s32.totalorder %s30, 4
      // Predicated region
      $region37: #{tpu_custom_call.1} parent=5 // pred_check
        %p356 = pneg %p355
      $region38: #{tpu_custom_call.1} parent=5 // pred_check_branch
        %358 = sbr.rel (%p356) target = $region40
      $region39: #{tpu_custom_call.1} parent=5 // pred_region
        // Predicated region
        $region41: #{tpu_custom_call.1} parent=39 // pred_check
          %p359 = pneg %p66
        $region42: #{tpu_custom_call.1} parent=39 // pred_check_branch
          %361 = sbr.rel (%p359) target = $region44
        $region43: #{tpu_custom_call.1} parent=39 // pred_region
          %s362 = sand.u32 %s56, 1
          %s363 = scalar_lea.sflag [#allocation4], %s362
          %s364 = sand.u32 %s56, 1
          %s365 = smul.addr %s364, 8
          %s366 = scalar_lea.vmem [#allocation3], %s365
          %s367 = smul.u32 %s37, 2
          %s368 = sadd.s32 %s367, %s38
          %s370 = ssub.s32 128, 128
          %371 = vsyncadd %s363, %s370
          %s372 = smul.addr %s368, 128
          %s373 = scalar_lea.hbm %s0, %s372
          %s375 = sshll.u32 %s366, 4
          %s376 = int_to_ptr.vmem [resolvable:$true] %s375
          %378 = dma.hbm_to_vmem [thread:$0]  %s373, 128, %s376, %s363
        $region44: #{tpu_custom_call.1} parent=39 // pred_fallthru
          _
        // Predicated region
        $region45: #{tpu_custom_call.1} parent=39 // pred_check
          %p379 = pneg %p96
        $region46: #{tpu_custom_call.1} parent=39 // pred_check_branch
          %381 = sbr.rel (%p379) target = $region48
        $region47: #{tpu_custom_call.1} parent=39 // pred_region
          %s382 = sand.u32 %s30, 1
          %s383 = scalar_lea.sflag [#allocation7], %s382
          %s384 = sand.u32 %s86, 1
          %s385 = smul.addr %s384, 8
          %s386 = scalar_lea.vmem [#allocation6], %s385
          %s387 = smul.u32 %s37, 2
          %s388 = sadd.s32 %s387, %s38
          %s390 = ssub.s32 128, 128
          %391 = vsyncadd %s383, %s390
          %s392 = smul.addr %s388, 128
          %s393 = scalar_lea.hbm %s1, %s392
          %s395 = sshll.u32 %s386, 4
          %s396 = int_to_ptr.vmem [resolvable:$true] %s395
          %398 = dma.hbm_to_vmem [thread:$0]  %s393, 128, %s396, %s383
        $region48: #{tpu_custom_call.1} parent=39 // pred_fallthru
          _
      $region40: #{tpu_custom_call.1} parent=5 // pred_fallthru
        _
      %p399 = scmp.le.s32.totalorder 1, %s30
      %p400 = scmp.lt.s32.totalorder %s30, 5
      %p401 = pnand %p399, %p400
      %p402 = pneg %p401
      // Predicated region
      $region49: #{tpu_custom_call.1} parent=5 // pred_check
        _
      $region50: #{tpu_custom_call.1} parent=5 // pred_check_branch
        %404 = sbr.rel (%p401) target = $region52
      $region51: #{tpu_custom_call.1} parent=5 // pred_region
        %s405 = ssub.s32 %s30, 1
        %s406 = sand.u32 %s59, 1
        %s407 = scalar_lea.sflag [#allocation4], %s406
        %s408 = sand.u32 %s59, 1
        %s409 = smul.addr %s408, 8
        %s410 = scalar_lea.vmem [#allocation3], %s409
        // Predicated region
        $region53: #{tpu_custom_call.1} parent=51 // pred_check
          %p411 = pneg %p72
        $region54: #{tpu_custom_call.1} parent=51 // pred_check_branch
          %413 = sbr.rel (%p411) target = $region56
        $region55: #{tpu_custom_call.1} parent=51 // pred_region
          %414 = dma.done %s407, 128
        $region56: #{tpu_custom_call.1} parent=51 // pred_fallthru
          _
        %s415 = sand.u32 %s35, 1
        %s416 = scalar_lea.sflag [#allocation7], %s415
        %s417 = sand.u32 %s89, 1
        %s418 = smul.addr %s417, 8
        %s419 = scalar_lea.vmem [#allocation6], %s418
        // Predicated region
        $region57: #{tpu_custom_call.1} parent=51 // pred_check
          %p420 = pneg %p102
        $region58: #{tpu_custom_call.1} parent=51 // pred_check_branch
          %422 = sbr.rel (%p420) target = $region60
        $region59: #{tpu_custom_call.1} parent=51 // pred_region
          %423 = dma.done %s416, 128
        $region60: #{tpu_custom_call.1} parent=51 // pred_fallthru
          _
        // Predicated region
        $region61: #{tpu_custom_call.1} parent=51 // pred_check
          %p424 = pneg %p144
        $region62: #{tpu_custom_call.1} parent=51 // pred_check_branch
          %426 = sbr.rel (%p424) target = $region64
        $region63: #{tpu_custom_call.1} parent=51 // pred_region
          %427 = dma.done [#allocation7], 480
        $region64: #{tpu_custom_call.1} parent=51 // pred_fallthru
          _
        // Predicated region
        $region65: #{tpu_custom_call.1} parent=51 // pred_check
          %p428 = pneg %p165
        $region66: #{tpu_custom_call.1} parent=51 // pred_check_branch
          %430 = sbr.rel (%p428) target = $region68
        $region67: #{tpu_custom_call.1} parent=51 // pred_region
          %431 = dma.done [#allocation10], 480
        $region68: #{tpu_custom_call.1} parent=51 // pred_fallthru
          _
        %s432 = sand.u32 %s59, 1
        %s433 = scalar_lea.sflag [#allocation4], %s432
        %s434 = sand.u32 %s59, 1
        %s435 = smul.addr %s434, 8
        %s436 = scalar_lea.vmem [#allocation3], %s435
        %p437 = pneg %p72
        %p438 = pneg %p69
        %s439 = sand.u32 %s35, 1
        %s440 = scalar_lea.sflag [#allocation7], %s439
        %s441 = sand.u32 %s89, 1
        %s442 = smul.addr %s441, 8
        %s443 = scalar_lea.vmem [#allocation6], %s442
        %p444 = pneg %p102
        %p445 = pneg %p99
        %p446 = pneg %p123
        %p447 = pneg %p120
        %p448 = pneg %p144
        %p449 = pneg %p141
        %p450 = pneg %p165
        %p451 = pneg %p162
        %p452 = pneg %p186
        %p453 = pneg %p183
        %p454 = pneg %p207
        %p455 = pneg %p204
        %p456 = pneg %p228
        %p457 = pneg %p225
        %p458 = pneg %p254
        %p459 = pneg %p251
        %s460 = sand.u32 %s241, 1
        %s461 = scalar_lea.sflag [#allocation5], %s460
        %s462 = sand.u32 %s241, 1
        %s463 = smul.addr %s462, 8
        %s464 = scalar_lea.vmem [#allocation11], %s463
        %p465 = pneg %p280
        %p466 = pneg %p277
        %s467 = sand.u32 %s35, 1
        %s468 = scalar_lea.sflag [#allocation13], %s467
        %s469 = sand.u32 %s267, 1
        %s470 = smul.addr %s469, 8
        %s471 = scalar_lea.vmem [#allocation12], %s470
        %p472 = pneg %p306
        %p473 = pneg %p303
        %s474 = sand.u32 %s35, 1
        %s475 = scalar_lea.sflag [#allocation13], %s474
        %s476 = sand.u32 %s293, 1
        %s477 = smul.addr %s476, 8
        %s478 = scalar_lea.vmem [#allocation14], %s477
        %s479 = smul.u32 %s39, 2
        %s480 = sadd.s32 %s479, %s40
        %s481 = smul.u32 %s39, 2
        %s482 = sadd.s32 %s481, %s40
        %p483 = scmp.eq.s32.totalorder %s40, 0
        // Predicated region
        $region69: #{tpu_custom_call.1} parent=51 // pred_check
          %p484 = pneg %p483
        $region70: #{tpu_custom_call.1} parent=51 // pred_check_branch
          %486 = sbr.rel (%p484) target = $region72
        $region71: #{tpu_custom_call.1} parent=51 // pred_region
          %vm487 = vcmask 7168
          %488 = vst.msk [vmem:[#allocation2] sm:$0xff] %vm487, 0.0
          %v489 = vld [vmem:[#allocation8] sm:$0xff]
          %v490 = vld [vmem:[#allocation8 + $0x8] sm:$0xff]
          %v491 = vld [vmem:[#allocation8 + $0x10] sm:$0xff]
          %v492 = vld [vmem:[#allocation8 + $0x18] sm:$0x3f]
          %v493 = vld [vmem:[#allocation9] sm:$0xff]
          %v494 = vld [vmem:[#allocation9 + $0x8] sm:$0xff]
          %v495 = vld [vmem:[#allocation9 + $0x10] sm:$0xff]
          %v496 = vld [vmem:[#allocation9 + $0x18] sm:$0x3f]
          %v497 = vsub.f32 %v489, %v493
          %v498 = vsub.f32 %v490, %v494
          %v499 = vsub.f32 %v491, %v495
          %v500 = vsub.f32 %v492, %v496
          %v501 = vmul.f32 %v497, %v497
          %v502 = vmul.f32 %v498, %v498
          %v503 = vmul.f32 %v499, %v499
          %v504 = vmul.f32 %v500, %v500
          %v505 = vld [vmem:[%s5] sm:$0xff]
          %v506 = vld [vmem:[%s5 + $0x8] sm:$0xff]
          %v509 = vlaneseq
          %v510 = vshrl.u32 %v509, 7
          %v511 = vsub.s32 0, %v510
          %v512 = vrot.slane %v505, %v511
          %v513 = vlaneseq
          %v514 = vshrl.u32 %v513, 7
          %v515 = vsub.s32 1, %v514
          %v516 = vrot.slane %v505, %v515
          %v517 = vlaneseq
          %v518 = vshrl.u32 %v517, 7
          %v519 = vsub.s32 2, %v518
          %v520 = vrot.slane %v505, %v519
          %v521 = vlaneseq
          %v522 = vshrl.u32 %v521, 7
          %v523 = vsub.s32 3, %v522
          %v524 = vrot.slane %v505, %v523
          %v525 = vlaneseq
          %v526 = vshrl.u32 %v525, 7
          %v527 = vsub.s32 4, %v526
          %v528 = vrot.slane %v505, %v527
          %v529 = vlaneseq
          %v530 = vshrl.u32 %v529, 7
          %v531 = vsub.s32 5, %v530
          %v532 = vrot.slane %v505, %v531
          %v533 = vlaneseq
          %v534 = vshrl.u32 %v533, 7
          %v535 = vsub.s32 6, %v534
          %v536 = vrot.slane %v505, %v535
          %v537 = vlaneseq
          %v538 = vshrl.u32 %v537, 7
          %v539 = vsub.s32 7, %v538
          %v540 = vrot.slane %v505, %v539
          %v541 = vlaneseq
          %v542 = vshrl.u32 %v541, 7
          %v543 = vsub.s32 0, %v542
          %v544 = vrot.slane %v506, %v543
          %v545 = vlaneseq
          %v546 = vshrl.u32 %v545, 7
          %v547 = vsub.s32 1, %v546
          %v548 = vrot.slane %v506, %v547
          %v549 = vlaneseq
          %v550 = vshrl.u32 %v549, 7
          %v551 = vsub.s32 2, %v550
          %v552 = vrot.slane %v506, %v551
          %v553 = vlaneseq
          %v554 = vshrl.u32 %v553, 7
          %v555 = vsub.s32 3, %v554
          %v556 = vrot.slane %v506, %v555
          %v557 = vlaneseq
          %v558 = vshrl.u32 %v557, 7
          %v559 = vsub.s32 4, %v558
          %v560 = vrot.slane %v506, %v559
          %v561 = vlaneseq
          %v562 = vshrl.u32 %v561, 7
          %v563 = vsub.s32 5, %v562
          %v564 = vrot.slane %v506, %v563
          %v565 = vlaneseq
          %v566 = vshrl.u32 %v565, 7
          %v567 = vsub.s32 6, %v566
          %v568 = vrot.slane %v506, %v567
          %v569 = vcombine.low %v512, %v516
          %v570 = vcombine.low %v520, %v524
          %v572 = vunpack.c.l.s4 1983009808
          %v573 = vunpack.c.0.s8 %v572
          %v574 = vlaneseq
          %v575 = vshrl.u32 %v574, 7
          %v576 = vsub.s32 %v573, %v575
          %v577 = vrot.slane %v569, %v576
          %v579 = vunpack.c.l.s4 1983009808
          %v580 = vunpack.c.0.s8 %v579
          %v581 = vlaneseq
          %v582 = vshrl.u32 %v581, 7
          %v583 = vsub.s32 %v580, %v582
          %v584 = vrot.slane %v570, %v583
          %v585 = vcombine.low %v577, %v584
          %v586 = vcombine.low %v528, %v532
          %v587 = vcombine.low %v536, %v540
          %v589 = vunpack.c.l.s4 1983009808
          %v590 = vunpack.c.0.s8 %v589
          %v591 = vlaneseq
          %v592 = vshrl.u32 %v591, 7
          %v593 = vsub.s32 %v590, %v592
          %v594 = vrot.slane %v586, %v593
          %v596 = vunpack.c.l.s4 1983009808
          %v597 = vunpack.c.0.s8 %v596
          %v598 = vlaneseq
          %v599 = vshrl.u32 %v598, 7
          %v600 = vsub.s32 %v597, %v599
          %v601 = vrot.slane %v587, %v600
          %v602 = vcombine.low %v594, %v601
          %v603 = vcombine.low %v544, %v548
          %v604 = vcombine.low %v552, %v556
          %v606 = vunpack.c.l.s4 1983009808
          %v607 = vunpack.c.0.s8 %v606
          %v608 = vlaneseq
          %v609 = vshrl.u32 %v608, 7
          %v610 = vsub.s32 %v607, %v609
          %v611 = vrot.slane %v603, %v610
          %v613 = vunpack.c.l.s4 1983009808
          %v614 = vunpack.c.0.s8 %v613
          %v615 = vlaneseq
          %v616 = vshrl.u32 %v615, 7
          %v617 = vsub.s32 %v614, %v616
          %v618 = vrot.slane %v604, %v617
          %v619 = vcombine.low %v611, %v618
          %v620 = vcombine.low %v560, %v564
          %v622 = vunpack.c.l.s4 1983009808
          %v623 = vunpack.c.0.s8 %v622
          %v624 = vlaneseq
          %v625 = vshrl.u32 %v624, 7
          %v626 = vsub.s32 %v623, %v625
          %v627 = vrot.slane %v620, %v626
          %v629 = vunpack.c.l.s4 1983009808
          %v630 = vunpack.c.0.s8 %v629
          %v631 = vlaneseq
          %v632 = vshrl.u32 %v631, 7
          %v633 = vsub.s32 %v630, %v632
          %v634 = vrot.slane %v568, %v633
          %v635 = vcombine.low %v627, %v634
          %v640 = vmul.f32 %v501, %v585
          %v641 = vmul.f32 %v502, %v602
          %v642 = vmul.f32 %v503, %v619
          %v643 = vmul.f32 %v504, %v635
          %v648 = vcombine.high %v640, %v640
          %v650 = vunpack.c.l.s4 1983009808
          %v651 = vunpack.c.0.s8 %v650
          %v652 = vlaneseq
          %v653 = vshrl.u32 %v652, 7
          %v654 = vsub.s32 %v651, %v653
          %v655 = vrot.slane %v640, %v654
          %v657 = vunpack.c.l.s4 1983009808
          %v658 = vunpack.c.0.s8 %v657
          %v659 = vlaneseq
          %v660 = vshrl.u32 %v659, 7
          %v661 = vsub.s32 %v658, %v660
          %v662 = vrot.slane %v648, %v661
          %v663 = vcombine.high %v655, %v655
          %v664 = vcombine.high %v662, %v662
          %v665 = vcombine.high %v641, %v641
          %v667 = vunpack.c.l.s4 1983009808
          %v668 = vunpack.c.0.s8 %v667
          %v669 = vlaneseq
          %v670 = vshrl.u32 %v669, 7
          %v671 = vsub.s32 %v668, %v670
          %v672 = vrot.slane %v641, %v671
          %v674 = vunpack.c.l.s4 1983009808
          %v675 = vunpack.c.0.s8 %v674
          %v676 = vlaneseq
          %v677 = vshrl.u32 %v676, 7
          %v678 = vsub.s32 %v675, %v677
          %v679 = vrot.slane %v665, %v678
          %v680 = vcombine.high %v672, %v672
          %v681 = vcombine.high %v679, %v679
          %v682 = vcombine.high %v642, %v642
          %v684 = vunpack.c.l.s4 1983009808
          %v685 = vunpack.c.0.s8 %v684
          %v686 = vlaneseq
          %v687 = vshrl.u32 %v686, 7
          %v688 = vsub.s32 %v685, %v687
          %v689 = vrot.slane %v642, %v688
          %v691 = vunpack.c.l.s4 1983009808
          %v692 = vunpack.c.0.s8 %v691
          %v693 = vlaneseq
          %v694 = vshrl.u32 %v693, 7
          %v695 = vsub.s32 %v692, %v694
          %v696 = vrot.slane %v682, %v695
          %v697 = vcombine.high %v689, %v689
          %v698 = vcombine.high %v696, %v696
          %v699 = vcombine.high %v643, %v643
          %v701 = vunpack.c.l.s4 1983009808
          %v702 = vunpack.c.0.s8 %v701
          %v703 = vlaneseq
          %v704 = vshrl.u32 %v703, 7
          %v705 = vsub.s32 %v702, %v704
          %v706 = vrot.slane %v643, %v705
          %v708 = vunpack.c.l.s4 1983009808
          %v709 = vunpack.c.0.s8 %v708
          %v710 = vlaneseq
          %v711 = vshrl.u32 %v710, 7
          %v712 = vsub.s32 %v709, %v711
          %v713 = vrot.slane %v699, %v712
          %v714 = vcombine.high %v706, %v706
          %vm730 = vcmask 1041408
          %v731 = vsel %vm730, %v655, 0.0
          %v732 = vsel %vm730, %v663, 0.0
          %v733 = vadd.f32 %v731, %v732
          %v734 = vsel %vm730, %v662, 0.0
          %v735 = vadd.f32 %v733, %v734
          %v736 = vsel %vm730, %v664, 0.0
          %v737 = vadd.f32 %v735, %v736
          %v738 = vsel %vm730, %v672, 0.0
          %v739 = vadd.f32 %v737, %v738
          %v740 = vsel %vm730, %v680, 0.0
          %v741 = vadd.f32 %v739, %v740
          %v742 = vsel %vm730, %v679, 0.0
          %v743 = vadd.f32 %v741, %v742
          %v744 = vsel %vm730, %v681, 0.0
          %v745 = vadd.f32 %v743, %v744
          %v746 = vsel %vm730, %v689, 0.0
          %v747 = vadd.f32 %v745, %v746
          %v748 = vsel %vm730, %v697, 0.0
          %v749 = vadd.f32 %v747, %v748
          %v750 = vsel %vm730, %v696, 0.0
          %v751 = vadd.f32 %v749, %v750
          %v752 = vsel %vm730, %v698, 0.0
          %v753 = vadd.f32 %v751, %v752
          %v754 = vsel %vm730, %v706, 0.0
          %v755 = vadd.f32 %v753, %v754
          %v756 = vsel %vm730, %v714, 0.0
          %v757 = vadd.f32 %v755, %v756
          %v758 = vsel %vm730, %v713, 0.0
          %v759 = vadd.f32 %v757, %v758
          %760 = vadd.xlane.f32.xlu0 %v759
          %v761 = vpop.xlane.xlu0 %760
          %v762 = vrot.slane %v761, 4
          %v763 = vadd.f32 %v761, %v762
          %v764 = vrot.slane %v763, 2
          %v765 = vadd.f32 %v763, %v764
          %v766 = vrot.slane %v765, 1
          %v767 = vadd.f32 %v765, %v766
          %s768 = vtos %v767
          %v769 = vstv %s768
          %770 = vst [vmem:[%s464] sm:$0xff] %v769
          %v771 = vld [vmem:[%s6] sm:$0x3]
          %v772 = vld [vmem:[%s7] sm:$0x3]
          %v773 = vmul.f32 %v771, %v772
          %vm774 = vcmask 254976
          %v775 = vsel %vm774, %v773, 0.0
          %776 = vadd.xlane.f32.xlu0 %v775
          %v777 = vpop.xlane.xlu0 %776
          %v778 = vsub.f32 1.0, %v777
          %v779 = vand.u32 2147483647, %v778
          %vm780 = vcmask 1024
          %v781 = vsel %vm780, %v779, 0.0
          %782 = vadd.xlane.f32.xlu0 %v781
          %v783 = vpop.xlane.xlu0 %782
          %v784 = vrot.slane %v783, 4
          %v785 = vadd.f32 %v783, %v784
          %v786 = vrot.slane %v785, 2
          %v787 = vadd.f32 %v785, %v786
          %v788 = vrot.slane %v787, 1
          %v789 = vadd.f32 %v787, %v788
          %s790 = vtos %v789
          %v791 = vstv %s790
          %792 = vst [vmem:[%s471] sm:$0xff] %v791
        $region72: #{tpu_custom_call.1} parent=51 // pred_fallthru
          _
        %v793 = vld [vmem:[%s410] sm:$0xff]
        %v794 = vld [vmem:[%s419] sm:$0xff]
        %v795 = vsub.f32 %v793, %v794
        %v796 = vld [vmem:[#allocation2] sm:$0xff]
        %v797 = vmul.f32 %v795, %v795
        %798 = vadd.xlane.f32.xlu0 %v797
        %v799 = vpop.xlane.xlu0 %798
        %v800 = vadd.f32 %v796, %v799
        %vm801 = vcmask 7168
        %802 = vst.msk [vmem:[#allocation2] sm:$0xff] %vm801, %v800
        %p803 = scmp.eq.s32.totalorder %s40, 1
        // Predicated region
        $region73: #{tpu_custom_call.1} parent=51 // pred_check
          %p804 = pneg %p803
        $region74: #{tpu_custom_call.1} parent=51 // pred_check_branch
          %806 = sbr.rel (%p804) target = $region76
        $region75: #{tpu_custom_call.1} parent=51 // pred_region
          %v807 = vld [vmem:[%s2] sm:$0xff]
          %v808 = vld [vmem:[#allocation2] sm:$0xff]
          %v809 = vmul.f32 %v807, %v807
          %v810 = vmul.f32 %v808, %v809
          %v811 = vsel %vm801, %v810, 0.0
          %812 = vadd.xlane.f32.xlu0 %v811
          %v813 = vpop.xlane.xlu0 %812
          %v814 = vrot.slane %v813, 4
          %v815 = vadd.f32 %v813, %v814
          %v816 = vrot.slane %v815, 2
          %v817 = vadd.f32 %v815, %v816
          %v818 = vrot.slane %v817, 1
          %v819 = vadd.f32 %v817, %v818
          %s820 = vtos %v819
          %v821 = vstv %s820
          %822 = vst [vmem:[%s478] sm:$0xff] %v821
        $region76: #{tpu_custom_call.1} parent=51 // pred_fallthru
          _
        %s823 = sand.u32 %s241, 1
        %s824 = scalar_lea.sflag [#allocation5], %s823
        %s825 = sand.u32 %s241, 1
        %s826 = smul.addr %s825, 8
        %s827 = scalar_lea.vmem [#allocation11], %s826
        %s828 = sand.u32 %s35, 1
        %s829 = scalar_lea.sflag [#allocation13], %s828
        %s830 = sand.u32 %s267, 1
        %s831 = smul.addr %s830, 8
        %s832 = scalar_lea.vmem [#allocation12], %s831
        %s833 = sand.u32 %s35, 1
        %s834 = scalar_lea.sflag [#allocation13], %s833
        %s835 = sand.u32 %s293, 1
        %s836 = smul.addr %s835, 8
        %s837 = scalar_lea.vmem [#allocation14], %s836
        // Predicated region
        $region77: #{tpu_custom_call.1} parent=51 // pred_check
          %p838 = pneg %p251
        $region78: #{tpu_custom_call.1} parent=51 // pred_check_branch
          %840 = sbr.rel (%p838) target = $region80
        $region79: #{tpu_custom_call.1} parent=51 // pred_region
          %s842 = ssub.s32 128, 128
          %843 = vsyncadd %s824, %s842
          %s844 = smul.addr %s39, 128
          %s845 = scalar_lea.hbm %s8, %s844
          %s847 = sshll.u32 %s827, 4
          %s848 = int_to_ptr.vmem [resolvable:$true] %s847
          %850 = dma.vmem_to_hbm [thread:$0]  %s848, 128, %s845, %s824
        $region80: #{tpu_custom_call.1} parent=51 // pred_fallthru
          _
        // Predicated region
        $region81: #{tpu_custom_call.1} parent=51 // pred_check
          %p851 = pneg %p277
        $region82: #{tpu_custom_call.1} parent=51 // pred_check_branch
          %853 = sbr.rel (%p851) target = $region84
        $region83: #{tpu_custom_call.1} parent=51 // pred_region
          %s855 = ssub.s32 128, 128
          %856 = vsyncadd %s829, %s855
          %s857 = smul.addr %s39, 128
          %s858 = scalar_lea.hbm %s9, %s857
          %s860 = sshll.u32 %s832, 4
          %s861 = int_to_ptr.vmem [resolvable:$true] %s860
          %863 = dma.vmem_to_hbm [thread:$0]  %s861, 128, %s858, %s829
        $region84: #{tpu_custom_call.1} parent=51 // pred_fallthru
          _
        // Predicated region
        $region85: #{tpu_custom_call.1} parent=51 // pred_check
          %p864 = pneg %p303
        $region86: #{tpu_custom_call.1} parent=51 // pred_check_branch
          %866 = sbr.rel (%p864) target = $region88
        $region87: #{tpu_custom_call.1} parent=51 // pred_region
          %s868 = ssub.s32 128, 128
          %869 = vsyncadd %s834, %s868
          %s870 = smul.addr %s39, 128
          %s871 = scalar_lea.hbm %s10, %s870
          %s873 = sshll.u32 %s837, 4
          %s874 = int_to_ptr.vmem [resolvable:$true] %s873
          %876 = dma.vmem_to_hbm [thread:$0]  %s874, 128, %s871, %s834
        $region88: #{tpu_custom_call.1} parent=51 // pred_fallthru
          _
      $region52: #{tpu_custom_call.1} parent=5 // pred_fallthru
        _
      %p877 = scmp.le.s32.totalorder 2, %s30
      // Predicated region
      $region89: #{tpu_custom_call.1} parent=5 // pred_check
        %p878 = pneg %p877
      $region90: #{tpu_custom_call.1} parent=5 // pred_check_branch
        %880 = sbr.rel (%p878) target = $region92
      $region91: #{tpu_custom_call.1} parent=5 // pred_region
        %s881 = ssub.s32 %s30, 2
        // Predicated region
        $region93: #{tpu_custom_call.1} parent=91 // pred_check
          %p882 = pneg %p257
        $region94: #{tpu_custom_call.1} parent=91 // pred_check_branch
          %884 = sbr.rel (%p882) target = $region96
        $region95: #{tpu_custom_call.1} parent=91 // pred_region
          %s885 = sand.u32 %s242, 1
          %s886 = scalar_lea.sflag [#allocation5], %s885
          %s887 = sand.u32 %s242, 1
          %s888 = smul.addr %s887, 8
          %s889 = scalar_lea.vmem [#allocation11], %s888
          %890 = dma.done %s886, 128
        $region96: #{tpu_custom_call.1} parent=91 // pred_fallthru
          _
        // Predicated region
        $region97: #{tpu_custom_call.1} parent=91 // pred_check
          %p891 = pneg %p283
        $region98: #{tpu_custom_call.1} parent=91 // pred_check_branch
          %893 = sbr.rel (%p891) target = $region100
        $region99: #{tpu_custom_call.1} parent=91 // pred_region
          %s894 = sand.u32 %s36, 1
          %s895 = scalar_lea.sflag [#allocation13], %s894
          %s896 = sand.u32 %s268, 1
          %s897 = smul.addr %s896, 8
          %s898 = scalar_lea.vmem [#allocation12], %s897
          %899 = dma.done %s895, 128
        $region100: #{tpu_custom_call.1} parent=91 // pred_fallthru
          _
        // Predicated region
        $region101: #{tpu_custom_call.1} parent=91 // pred_check
          %p900 = pneg %p309
        $region102: #{tpu_custom_call.1} parent=91 // pred_check_branch
          %902 = sbr.rel (%p900) target = $region104
        $region103: #{tpu_custom_call.1} parent=91 // pred_region
          %s903 = sand.u32 %s36, 1
          %s904 = scalar_lea.sflag [#allocation13], %s903
          %s905 = sand.u32 %s294, 1
          %s906 = smul.addr %s905, 8
          %s907 = scalar_lea.vmem [#allocation14], %s906
          %908 = dma.done %s904, 128
        $region104: #{tpu_custom_call.1} parent=91 // pred_fallthru
          _
      $region92: #{tpu_custom_call.1} parent=5 // pred_fallthru
        _
    $region6: #{tpu_custom_call.1} parent=1 // loop_footer
      %s34 = sadd.s32 1, %s30
    $region7: #{tpu_custom_call.1} parent=1 // loop_footer_branch
      %29 = sbr.rel target = $region3
    $region8: #{tpu_custom_call.1} parent=1 // loop_exit
      _
    %909 = vsyncpa [#allocation4], 1
    %s910 = scalar_lea.sflag [#allocation4], 1
    %911 = vsyncpa %s910, 1
    %912 = vsyncpa [#allocation7], 1
    %s913 = scalar_lea.sflag [#allocation7], 1
    %914 = vsyncpa %s913, 1
    %915 = vsyncpa [#allocation10], 1
    %916 = vsyncpa [#allocation5], 1
    %s917 = scalar_lea.sflag [#allocation5], 1
    %918 = vsyncpa %s917, 1
    %919 = vsyncpa [#allocation13], 1
    %s920 = scalar_lea.sflag [#allocation13], 1
    %921 = vsyncpa %s920, 1

</llo_original>
